<compile_context>
chip_gen: v5e
topology: v5e:2x2
jax: 0.10.0
libtpu: 0.0.40
codegen_flags: <defaults>
</compile_context>

<pallas_src>
import functools

import jax
import jax.numpy as jnp
from jax import lax
from jax.experimental import pallas as pl
from jax.experimental.pallas import tpu as pltpu


def rnn_chunk_kernel(x_ref, h0_ref, wih_ref, whh_ref, b_ref, wfc_ref, bfc_ref,
                     y_ref, hout_ref, h_bf16, *, chunk, batch_pad):
    """One time-chunk of Embedding-projected RNN + Linear head.

    x_ref   : (Tt*BP, E)   bf16  time-major slice of the embedded input
    h0_ref  : (BP, H)      f32   initial hidden state
    wih_ref : (E, H)       bf16
    whh_ref : (H, H)       bf16
    b_ref   : (1, H)       f32   (b_ih + b_hh combined)
    wfc_ref : (H, V)       bf16
    bfc_ref : (1, V)       f32
    y_ref   : (BP, Tt*V)   f32   logits chunk, BATCH-major (lane-dense stores)
    hout_ref: (BP, H)      f32   resident output, doubles as the h carry
    h_bf16  : (Tt*BP, H)   bf16  VMEM scratch holding h_t for the deferred FC
    """
    i = pl.program_id(0)
    Tt, BP = chunk, batch_pad
    V = wfc_ref.shape[1]

    @pl.when(i == 0)
    def _init():
        hout_ref[...] = h0_ref[...]

    # ---- 1) Input projection for the whole chunk in ONE matmul, off the serial
    #         chain.  P stays in vregs; per-step access is a static vreg select.
    p = (jnp.dot(x_ref[...], wih_ref[...], preferred_element_type=jnp.float32)
         + b_ref[...])                                        # (Tt*BP, H) f32

    whh = whh_ref[...]                                        # hoisted (H, H) bf16

    # ---- 2) Serial recurrence: h_t = tanh(P[t] + h_{t-1} @ W_hh).
    #         Unroll == chunk size (<= 8).  The bf16 store of h_t has no in-loop
    #         consumer, so only the matmul + tanh sit on the dependency chain.
    h = hout_ref[...]                                         # carry from prev chunk
    for t in range(Tt):
        h = jnp.tanh(p[t * BP:(t + 1) * BP, :]
                     + jnp.dot(h.astype(whh.dtype), whh,
                               preferred_element_type=jnp.float32))
        h_bf16[t * BP:(t + 1) * BP, :] = h.astype(h_bf16.dtype)
    hout_ref[...] = h

    # ---- 3) Deferred FC head: ONE (Tt*BP, H) x (H, V) matmul fed straight from
    #         the bf16 buffer, then dense (BP, 256) stores that place the chunk
    #         batch-major -> wrapper needs only a free reshape (no transpose).
    y = (jnp.dot(h_bf16[...], wfc_ref[...], preferred_element_type=jnp.float32)
         + bfc_ref[...])                                      # (Tt*BP, V) f32
    for t in range(Tt):
        y_ref[:, t * V:(t + 1) * V] = y[t * BP:(t + 1) * BP, :]


def _pick_chunk(T, target=8):
    """Largest divisor of T that is <= target (caps per-chunk unroll)."""
    c = min(T, target)
    while T % c:
        c -= 1
    return c


def modele_forward(lot_X, etat_0, params, *, matmul_dtype=jnp.bfloat16,
                   chunk_target=8):
    """lot_X: (B, T) int32 token ids, etat_0: (1, B, H) float32.
    Returns (lot_Yt: (B, T, V) float32, etat: (1, B, H) float32)."""
    emb_table = params["embedding"]                    # (V, E) f32
    wih = params["w_ih"].astype(matmul_dtype)          # (E, H)
    whh = params["w_hh"].astype(matmul_dtype)          # (H, H)
    b = params["b"]                                    # (1, H) f32
    wfc = params["w_fc"].astype(matmul_dtype)          # (H, V)
    bfc = params["b_fc"]                               # (1, V) f32

    B, T = lot_X.shape
    E = emb_table.shape[1]
    H = whh.shape[1]
    V = wfc.shape[1]

    # Pad batch to sublane granularity (8) -> dense MXU rows, unmasked stores.
    BP = max(8, ((B + 7) // 8) * 8)
    Tt = _pick_chunk(T, chunk_target)
    n_chunks = T // Tt

    # TODO(synk): embedding gather stays in XLA (jnp.take); a scalar-prefetch +
    # pl.Element index_map gather kernel is not worth it at E=64.
    x_tbe = jnp.take(emb_table, lot_X.T, axis=0)       # (T, B, E) time-major
    if BP != B:
        x_tbe = jnp.pad(x_tbe, ((0, 0), (0, BP - B), (0, 0)))
    x_flat = x_tbe.reshape(T * BP, E).astype(matmul_dtype)

    h0 = etat_0[0]                                     # (B, H)
    if BP != B:
        h0 = jnp.pad(h0, ((0, BP - B), (0, 0)))

    kernel = functools.partial(rnn_chunk_kernel, chunk=Tt, batch_pad=BP)

    y2d, h_final = pl.pallas_call(
        kernel,
        out_shape=(
            jax.ShapeDtypeStruct((BP, T * V), jnp.float32),   # batch-major logits
            jax.ShapeDtypeStruct((BP, H), jnp.float32),       # final hidden state
        ),
        grid=(n_chunks,),
        in_specs=[
            pl.BlockSpec((Tt * BP, E), lambda i: (i, 0)),     # X chunk (pipelined)
            pl.BlockSpec((BP, H), lambda i: (0, 0)),          # h0
            pl.BlockSpec((E, H), lambda i: (0, 0)),           # W_ih
            pl.BlockSpec((H, H), lambda i: (0, 0)),           # W_hh
            pl.BlockSpec((1, H), lambda i: (0, 0)),           # b
            pl.BlockSpec((H, V), lambda i: (0, 0)),           # W_fc
            pl.BlockSpec((1, V), lambda i: (0, 0)),           # b_fc
        ],
        out_specs=(
            pl.BlockSpec((BP, Tt * V), lambda i: (0, i)),     # logits chunk
            pl.BlockSpec((BP, H), lambda i: (0, 0)),          # resident h carry
        ),
        scratch_shapes=[pltpu.VMEM((Tt * BP, H), jnp.bfloat16)],
        compiler_params=pltpu.CompilerParams(
            dimension_semantics=("arbitrary",),               # serial recurrence
        ),
    )(x_flat, h0, wih, whh, b, wfc, bfc)

    # Free reshape + batch slice; NO post-kernel transpose of the logits.
    lot_Yt = y2d.reshape(BP, T, V)[:B]                        # (B, T, V)
    etat = h_final[:B][None]                                  # (1, B, H)
    return lot_Yt, etat


def make_params(key, vocab, embed_dim, hidden):
    """Deterministic synthetic parameters matching the nn.Module shapes."""
    ks = jax.random.split(key, 7)
    s_rnn = 1.0 / jnp.sqrt(hidden)
    s_fc = 1.0 / jnp.sqrt(hidden)
    return {
        "embedding": jax.random.normal(ks[0], (vocab, embed_dim), jnp.float32),
        # stored transposed vs torch (torch: weight_ih_l0 is (H, E)) -> (E, H)
        "w_ih": jax.random.uniform(ks[1], (embed_dim, hidden), jnp.float32, -s_rnn, s_rnn),
        "w_hh": jax.random.uniform(ks[2], (hidden, hidden), jnp.float32, -s_rnn, s_rnn),
        # combined bias b_ih_l0 + b_hh_l0
        "b": (jax.random.uniform(ks[3], (1, hidden), jnp.float32, -s_rnn, s_rnn)
              + jax.random.uniform(ks[4], (1, hidden), jnp.float32, -s_rnn, s_rnn)),
        # fc weight transposed vs torch (torch: (V, H)) -> (H, V)
        "w_fc": jax.random.uniform(ks[5], (hidden, vocab), jnp.float32, -s_fc, s_fc),
        "b_fc": jax.random.uniform(ks[6], (1, vocab), jnp.float32, -s_fc, s_fc),
    }


def reference_forward(lot_X, etat_0, params, matmul_dtype=jnp.bfloat16):
    """Pure-JAX reference (lax.scan RNN) using the same mixed-precision scheme
    as the kernel (bf16 matmul operands, f32 accumulation/state)."""
    wih = params["w_ih"].astype(matmul_dtype)
    whh = params["w_hh"].astype(matmul_dtype)
    wfc = params["w_fc"].astype(matmul_dtype)

    emb = jnp.take(params["embedding"], lot_X, axis=0)            # (B, T, E)
    x_tbe = jnp.transpose(emb, (1, 0, 2)).astype(matmul_dtype)    # (T, B, E)
    h0 = etat_0[0]

    def step(h, x_t):
        pre = (jnp.dot(x_t, wih, preferred_element_type=jnp.float32)
               + jnp.dot(h.astype(matmul_dtype), whh,
                         preferred_element_type=jnp.float32)
               + params["b"])
        h_new = jnp.tanh(pre)
        y_t = (jnp.dot(h_new.astype(matmul_dtype), wfc,
                       preferred_element_type=jnp.float32)
               + params["b_fc"])
        return h_new, y_t

    h_final, y_tbv = lax.scan(step, h0, x_tbe)
    return jnp.transpose(y_tbv, (1, 0, 2)), h_final[None]


if __name__ == "__main__":
    # Small shapes consistent with the module: vocab=256, embed=64, hidden=128.
    B, T = 2, 8
    VOCAB, EMBED, HIDDEN = 256, 64, 128

    key = jax.random.PRNGKey(0)
    k_params, k_x = jax.random.split(key)
    params = make_params(k_params, VOCAB, EMBED, HIDDEN)

    lot_X = jax.random.randint(k_x, (B, T), 0, VOCAB, dtype=jnp.int32)
    # initializer_etat: zeros of shape (num_layers, batch, hidden)
    etat_0 = jnp.zeros((1, B, HIDDEN), jnp.float32)

    lot_Yt, etat = modele_forward(lot_X, etat_0, params)
    jax.block_until_ready((lot_Yt, etat))

    ref_Y, ref_h = reference_forward(lot_X, etat_0, params)
    assert lot_Yt.shape == (B, T, VOCAB) and etat.shape == (1, B, HIDDEN)
    assert jnp.allclose(lot_Yt, ref_Y, atol=1e-3, rtol=1e-3), \
        float(jnp.max(jnp.abs(lot_Yt - ref_Y)))
    assert jnp.allclose(etat, ref_h, atol=1e-3, rtol=1e-3), \
        float(jnp.max(jnp.abs(etat - ref_h)))

    print("KERNEL_OK")
</pallas_src>

<mosaic_0001>
module attributes {stable_mosaic.version = 11 : i64} {
  func.func @rnn_chunk_kernel(%arg0: i32, %arg1: memref<64x64xbf16, #tpu.memory_space<vmem>>, %arg2: memref<8x128xf32, #tpu.memory_space<vmem>>, %arg3: memref<64x128xbf16, #tpu.memory_space<vmem>>, %arg4: memref<128x128xbf16, #tpu.memory_space<vmem>>, %arg5: memref<1x128xf32, #tpu.memory_space<vmem>>, %arg6: memref<128x256xbf16, #tpu.memory_space<vmem>>, %arg7: memref<1x256xf32, #tpu.memory_space<vmem>>, %arg8: memref<8x2048xf32, #tpu.memory_space<vmem>>, %arg9: memref<8x128xf32, #tpu.memory_space<vmem>>, %arg10: memref<64x128xbf16, #tpu.memory_space<vmem>>) attributes {dimension_semantics = [#tpu.dimension_semantics<arbitrary>], iteration_bounds = array<i64: 1>, scalar_prefetch = 0 : i64, scratch_operands = 1 : i64, tpu.core_type = #tpu.core_type<tc>, window_params = [{transform_indices = @transform_0, window_bounds = array<i64: 64, 64>}, {pipeline_mode = #tpu.pipeline_mode<synchronous>, transform_indices = @transform_1, window_bounds = array<i64: 8, 128>}, {pipeline_mode = #tpu.pipeline_mode<synchronous>, transform_indices = @transform_2, window_bounds = array<i64: 64, 128>}, {pipeline_mode = #tpu.pipeline_mode<synchronous>, transform_indices = @transform_3, window_bounds = array<i64: 128, 128>}, {pipeline_mode = #tpu.pipeline_mode<synchronous>, transform_indices = @transform_4, window_bounds = array<i64: 1, 128>}, {pipeline_mode = #tpu.pipeline_mode<synchronous>, transform_indices = @transform_5, window_bounds = array<i64: 128, 256>}, {pipeline_mode = #tpu.pipeline_mode<synchronous>, transform_indices = @transform_6, window_bounds = array<i64: 1, 256>}, {transform_indices = @transform_7, window_bounds = array<i64: 8, 2048>}, {pipeline_mode = #tpu.pipeline_mode<synchronous>, transform_indices = @transform_8, window_bounds = array<i64: 8, 128>}]} {
    %c0_i32 = arith.constant 0 : i32
    %0 = arith.cmpi eq, %arg0, %c0_i32 : i32
    %1 = arith.extui %0 : i1 to i32
    %c0_i32_0 = arith.constant 0 : i32
    %2 = arith.cmpi ne, %1, %c0_i32_0 : i32
    scf.if %2 {
      %c0_45 = arith.constant 0 : index
      %c0_46 = arith.constant 0 : index
      %90 = vector.load %arg2[%c0_45, %c0_46] : memref<8x128xf32, #tpu.memory_space<vmem>>, vector<8x128xf32>
      %c0_47 = arith.constant 0 : index
      %c0_48 = arith.constant 0 : index
      %91 = vector.load %arg9[%c0_47, %c0_48] : memref<8x128xf32, #tpu.memory_space<vmem>>, vector<8x128xf32>
      tpu.vector_store %arg9[%c0_47, %c0_48], %90 {strides = array<i32>} : memref<8x128xf32, #tpu.memory_space<vmem>>, vector<8x128xf32>,
    } else {
    }
    %c0 = arith.constant 0 : index
    %c0_1 = arith.constant 0 : index
    %3 = vector.load %arg1[%c0, %c0_1] : memref<64x64xbf16, #tpu.memory_space<vmem>>, vector<64x64xbf16>
    %c0_2 = arith.constant 0 : index
    %c0_3 = arith.constant 0 : index
    %4 = vector.load %arg3[%c0_2, %c0_3] : memref<64x128xbf16, #tpu.memory_space<vmem>>, vector<64x128xbf16>
    %cst = arith.constant dense<0.000000e+00> : vector<64x128xf32>
    %5 = tpu.matmul %3, %4, %cst {dimension_numbers = #tpu.dot_dimension_numbers<[1], [0], [0], [1], [0, 0, 1, 1], [], []>} : vector<64x64xbf16>, vector<64x128xbf16>, vector<64x128xf32> -> vector<64x128xf32>
    %c0_4 = arith.constant 0 : index
    %c0_5 = arith.constant 0 : index
    %6 = vector.load %arg5[%c0_4, %c0_5] : memref<1x128xf32, #tpu.memory_space<vmem>>, vector<1x128xf32>
    %7 = vector.broadcast %6 : vector<1x128xf32> to vector<64x128xf32>
    %8 = arith.addf %5, %7 : vector<64x128xf32>
    %c0_6 = arith.constant 0 : index
    %c0_7 = arith.constant 0 : index
    %9 = vector.load %arg4[%c0_6, %c0_7] : memref<128x128xbf16, #tpu.memory_space<vmem>>, vector<128x128xbf16>
    %c0_8 = arith.constant 0 : index
    %c0_9 = arith.constant 0 : index
    %10 = vector.load %arg9[%c0_8, %c0_9] : memref<8x128xf32, #tpu.memory_space<vmem>>, vector<8x128xf32>
    %11 = vector.extract_strided_slice %8 {offsets = [0, 0], sizes = [8, 128], strides = [1, 1]} : vector<64x128xf32> to vector<8x128xf32>
    %12 = arith.truncf %10 : vector<8x128xf32> to vector<8x128xbf16>
    %cst_10 = arith.constant dense<0.000000e+00> : vector<8x128xf32>
    %13 = tpu.matmul %12, %9, %cst_10 {dimension_numbers = #tpu.dot_dimension_numbers<[1], [0], [0], [1], [0, 0, 1, 1], [], []>} : vector<8x128xbf16>, vector<128x128xbf16>, vector<8x128xf32> -> vector<8x128xf32>
    %14 = arith.addf %11, %13 : vector<8x128xf32>
    %15 = math.tanh %14 : vector<8x128xf32>
    %16 = arith.truncf %15 : vector<8x128xf32> to vector<8x128xbf16>
    %c0_11 = arith.constant 0 : index
    %c0_12 = arith.constant 0 : index
    %17 = vector.load %arg10[%c0_11, %c0_12] : memref<64x128xbf16, #tpu.memory_space<vmem>>, vector<8x128xbf16>
    tpu.vector_store %arg10[%c0_11, %c0_12], %16 {strides = array<i32>} : memref<64x128xbf16, #tpu.memory_space<vmem>>, vector<8x128xbf16>,
    %18 = vector.extract_strided_slice %8 {offsets = [8, 0], sizes = [8, 128], strides = [1, 1]} : vector<64x128xf32> to vector<8x128xf32>
    %19 = arith.truncf %15 : vector<8x128xf32> to vector<8x128xbf16>
    %cst_13 = arith.constant dense<0.000000e+00> : vector<8x128xf32>
    %20 = tpu.matmul %19, %9, %cst_13 {dimension_numbers = #tpu.dot_dimension_numbers<[1], [0], [0], [1], [0, 0, 1, 1], [], []>} : vector<8x128xbf16>, vector<128x128xbf16>, vector<8x128xf32> -> vector<8x128xf32>
    %21 = arith.addf %18, %20 : vector<8x128xf32>
    %22 = math.tanh %21 : vector<8x128xf32>
    %23 = arith.truncf %22 : vector<8x128xf32> to vector<8x128xbf16>
    %c8 = arith.constant 8 : index
    %c0_14 = arith.constant 0 : index
    %24 = vector.load %arg10[%c8, %c0_14] : memref<64x128xbf16, #tpu.memory_space<vmem>>, vector<8x128xbf16>
    tpu.vector_store %arg10[%c8, %c0_14], %23 {strides = array<i32>} : memref<64x128xbf16, #tpu.memory_space<vmem>>, vector<8x128xbf16>,
    %25 = vector.extract_strided_slice %8 {offsets = [16, 0], sizes = [8, 128], strides = [1, 1]} : vector<64x128xf32> to vector<8x128xf32>
    %26 = arith.truncf %22 : vector<8x128xf32> to vector<8x128xbf16>
    %cst_15 = arith.constant dense<0.000000e+00> : vector<8x128xf32>
    %27 = tpu.matmul %26, %9, %cst_15 {dimension_numbers = #tpu.dot_dimension_numbers<[1], [0], [0], [1], [0, 0, 1, 1], [], []>} : vector<8x128xbf16>, vector<128x128xbf16>, vector<8x128xf32> -> vector<8x128xf32>
    %28 = arith.addf %25, %27 : vector<8x128xf32>
    %29 = math.tanh %28 : vector<8x128xf32>
    %30 = arith.truncf %29 : vector<8x128xf32> to vector<8x128xbf16>
    %c16 = arith.constant 16 : index
    %c0_16 = arith.constant 0 : index
    %31 = vector.load %arg10[%c16, %c0_16] : memref<64x128xbf16, #tpu.memory_space<vmem>>, vector<8x128xbf16>
    tpu.vector_store %arg10[%c16, %c0_16], %30 {strides = array<i32>} : memref<64x128xbf16, #tpu.memory_space<vmem>>, vector<8x128xbf16>,
    %32 = vector.extract_strided_slice %8 {offsets = [24, 0], sizes = [8, 128], strides = [1, 1]} : vector<64x128xf32> to vector<8x128xf32>
    %33 = arith.truncf %29 : vector<8x128xf32> to vector<8x128xbf16>
    %cst_17 = arith.constant dense<0.000000e+00> : vector<8x128xf32>
    %34 = tpu.matmul %33, %9, %cst_17 {dimension_numbers = #tpu.dot_dimension_numbers<[1], [0], [0], [1], [0, 0, 1, 1], [], []>} : vector<8x128xbf16>, vector<128x128xbf16>, vector<8x128xf32> -> vector<8x128xf32>
    %35 = arith.addf %32, %34 : vector<8x128xf32>
    %36 = math.tanh %35 : vector<8x128xf32>
    %37 = arith.truncf %36 : vector<8x128xf32> to vector<8x128xbf16>
    %c24 = arith.constant 24 : index
    %c0_18 = arith.constant 0 : index
    %38 = vector.load %arg10[%c24, %c0_18] : memref<64x128xbf16, #tpu.memory_space<vmem>>, vector<8x128xbf16>
    tpu.vector_store %arg10[%c24, %c0_18], %37 {strides = array<i32>} : memref<64x128xbf16, #tpu.memory_space<vmem>>, vector<8x128xbf16>,
    %39 = vector.extract_strided_slice %8 {offsets = [32, 0], sizes = [8, 128], strides = [1, 1]} : vector<64x128xf32> to vector<8x128xf32>
    %40 = arith.truncf %36 : vector<8x128xf32> to vector<8x128xbf16>
    %cst_19 = arith.constant dense<0.000000e+00> : vector<8x128xf32>
    %41 = tpu.matmul %40, %9, %cst_19 {dimension_numbers = #tpu.dot_dimension_numbers<[1], [0], [0], [1], [0, 0, 1, 1], [], []>} : vector<8x128xbf16>, vector<128x128xbf16>, vector<8x128xf32> -> vector<8x128xf32>
    %42 = arith.addf %39, %41 : vector<8x128xf32>
    %43 = math.tanh %42 : vector<8x128xf32>
    %44 = arith.truncf %43 : vector<8x128xf32> to vector<8x128xbf16>
    %c32 = arith.constant 32 : index
    %c0_20 = arith.constant 0 : index
    %45 = vector.load %arg10[%c32, %c0_20] : memref<64x128xbf16, #tpu.memory_space<vmem>>, vector<8x128xbf16>
    tpu.vector_store %arg10[%c32, %c0_20], %44 {strides = array<i32>} : memref<64x128xbf16, #tpu.memory_space<vmem>>, vector<8x128xbf16>,
    %46 = vector.extract_strided_slice %8 {offsets = [40, 0], sizes = [8, 128], strides = [1, 1]} : vector<64x128xf32> to vector<8x128xf32>
    %47 = arith.truncf %43 : vector<8x128xf32> to vector<8x128xbf16>
    %cst_21 = arith.constant dense<0.000000e+00> : vector<8x128xf32>
    %48 = tpu.matmul %47, %9, %cst_21 {dimension_numbers = #tpu.dot_dimension_numbers<[1], [0], [0], [1], [0, 0, 1, 1], [], []>} : vector<8x128xbf16>, vector<128x128xbf16>, vector<8x128xf32> -> vector<8x128xf32>
    %49 = arith.addf %46, %48 : vector<8x128xf32>
    %50 = math.tanh %49 : vector<8x128xf32>
    %51 = arith.truncf %50 : vector<8x128xf32> to vector<8x128xbf16>
    %c40 = arith.constant 40 : index
    %c0_22 = arith.constant 0 : index
    %52 = vector.load %arg10[%c40, %c0_22] : memref<64x128xbf16, #tpu.memory_space<vmem>>, vector<8x128xbf16>
    tpu.vector_store %arg10[%c40, %c0_22], %51 {strides = array<i32>} : memref<64x128xbf16, #tpu.memory_space<vmem>>, vector<8x128xbf16>,
    %53 = vector.extract_strided_slice %8 {offsets = [48, 0], sizes = [8, 128], strides = [1, 1]} : vector<64x128xf32> to vector<8x128xf32>
    %54 = arith.truncf %50 : vector<8x128xf32> to vector<8x128xbf16>
    %cst_23 = arith.constant dense<0.000000e+00> : vector<8x128xf32>
    %55 = tpu.matmul %54, %9, %cst_23 {dimension_numbers = #tpu.dot_dimension_numbers<[1], [0], [0], [1], [0, 0, 1, 1], [], []>} : vector<8x128xbf16>, vector<128x128xbf16>, vector<8x128xf32> -> vector<8x128xf32>
    %56 = arith.addf %53, %55 : vector<8x128xf32>
    %57 = math.tanh %56 : vector<8x128xf32>
    %58 = arith.truncf %57 : vector<8x128xf32> to vector<8x128xbf16>
    %c48 = arith.constant 48 : index
    %c0_24 = arith.constant 0 : index
    %59 = vector.load %arg10[%c48, %c0_24] : memref<64x128xbf16, #tpu.memory_space<vmem>>, vector<8x128xbf16>
    tpu.vector_store %arg10[%c48, %c0_24], %58 {strides = array<i32>} : memref<64x128xbf16, #tpu.memory_space<vmem>>, vector<8x128xbf16>,
    %60 = vector.extract_strided_slice %8 {offsets = [56, 0], sizes = [8, 128], strides = [1, 1]} : vector<64x128xf32> to vector<8x128xf32>
    %61 = arith.truncf %57 : vector<8x128xf32> to vector<8x128xbf16>
    %cst_25 = arith.constant dense<0.000000e+00> : vector<8x128xf32>
    %62 = tpu.matmul %61, %9, %cst_25 {dimension_numbers = #tpu.dot_dimension_numbers<[1], [0], [0], [1], [0, 0, 1, 1], [], []>} : vector<8x128xbf16>, vector<128x128xbf16>, vector<8x128xf32> -> vector<8x128xf32>
    %63 = arith.addf %60, %62 : vector<8x128xf32>
    %64 = math.tanh %63 : vector<8x128xf32>
    %65 = arith.truncf %64 : vector<8x128xf32> to vector<8x128xbf16>
    %c56 = arith.constant 56 : index
    %c0_26 = arith.constant 0 : index
    %66 = vector.load %arg10[%c56, %c0_26] : memref<64x128xbf16, #tpu.memory_space<vmem>>, vector<8x128xbf16>
    tpu.vector_store %arg10[%c56, %c0_26], %65 {strides = array<i32>} : memref<64x128xbf16, #tpu.memory_space<vmem>>, vector<8x128xbf16>,
    %c0_27 = arith.constant 0 : index
    %c0_28 = arith.constant 0 : index
    %67 = vector.load %arg9[%c0_27, %c0_28] : memref<8x128xf32, #tpu.memory_space<vmem>>, vector<8x128xf32>
    tpu.vector_store %arg9[%c0_27, %c0_28], %64 {strides = array<i32>} : memref<8x128xf32, #tpu.memory_space<vmem>>, vector<8x128xf32>,
    %c0_29 = arith.constant 0 : index
    %c0_30 = arith.constant 0 : index
    %68 = vector.load %arg10[%c0_29, %c0_30] : memref<64x128xbf16, #tpu.memory_space<vmem>>, vector<64x128xbf16>
    %c0_31 = arith.constant 0 : index
    %c0_32 = arith.constant 0 : index
    %69 = vector.load %arg6[%c0_31, %c0_32] : memref<128x256xbf16, #tpu.memory_space<vmem>>, vector<128x256xbf16>
    %cst_33 = arith.constant dense<0.000000e+00> : vector<64x256xf32>
    %70 = tpu.matmul %68, %69, %cst_33 {dimension_numbers = #tpu.dot_dimension_numbers<[1], [0], [0], [1], [0, 0, 1, 1], [], []>} : vector<64x128xbf16>, vector<128x256xbf16>, vector<64x256xf32> -> vector<64x256xf32>
    %c0_34 = arith.constant 0 : index
    %c0_35 = arith.constant 0 : index
    %71 = vector.load %arg7[%c0_34, %c0_35] : memref<1x256xf32, #tpu.memory_space<vmem>>, vector<1x256xf32>
    %72 = vector.broadcast %71 : vector<1x256xf32> to vector<64x256xf32>
    %73 = arith.addf %70, %72 : vector<64x256xf32>
    %74 = vector.extract_strided_slice %73 {offsets = [0, 0], sizes = [8, 256], strides = [1, 1]} : vector<64x256xf32> to vector<8x256xf32>
    %c0_36 = arith.constant 0 : index
    %c0_37 = arith.constant 0 : index
    %75 = vector.load %arg8[%c0_36, %c0_37] : memref<8x2048xf32, #tpu.memory_space<vmem>>, vector<8x256xf32>
    tpu.vector_store %arg8[%c0_36, %c0_37], %74 {strides = array<i32>} : memref<8x2048xf32, #tpu.memory_space<vmem>>, vector<8x256xf32>,
    %76 = vector.extract_strided_slice %73 {offsets = [8, 0], sizes = [8, 256], strides = [1, 1]} : vector<64x256xf32> to vector<8x256xf32>
    %c0_38 = arith.constant 0 : index
    %c256 = arith.constant 256 : index
    %77 = vector.load %arg8[%c0_38, %c256] : memref<8x2048xf32, #tpu.memory_space<vmem>>, vector<8x256xf32>
    tpu.vector_store %arg8[%c0_38, %c256], %76 {strides = array<i32>} : memref<8x2048xf32, #tpu.memory_space<vmem>>, vector<8x256xf32>,
    %78 = vector.extract_strided_slice %73 {offsets = [16, 0], sizes = [8, 256], strides = [1, 1]} : vector<64x256xf32> to vector<8x256xf32>
    %c0_39 = arith.constant 0 : index
    %c512 = arith.constant 512 : index
    %79 = vector.load %arg8[%c0_39, %c512] : memref<8x2048xf32, #tpu.memory_space<vmem>>, vector<8x256xf32>
    tpu.vector_store %arg8[%c0_39, %c512], %78 {strides = array<i32>} : memref<8x2048xf32, #tpu.memory_space<vmem>>, vector<8x256xf32>,
    %80 = vector.extract_strided_slice %73 {offsets = [24, 0], sizes = [8, 256], strides = [1, 1]} : vector<64x256xf32> to vector<8x256xf32>
    %c0_40 = arith.constant 0 : index
    %c768 = arith.constant 768 : index
    %81 = vector.load %arg8[%c0_40, %c768] : memref<8x2048xf32, #tpu.memory_space<vmem>>, vector<8x256xf32>
    tpu.vector_store %arg8[%c0_40, %c768], %80 {strides = array<i32>} : memref<8x2048xf32, #tpu.memory_space<vmem>>, vector<8x256xf32>,
    %82 = vector.extract_strided_slice %73 {offsets = [32, 0], sizes = [8, 256], strides = [1, 1]} : vector<64x256xf32> to vector<8x256xf32>
    %c0_41 = arith.constant 0 : index
    %c1024 = arith.constant 1024 : index
    %83 = vector.load %arg8[%c0_41, %c1024] : memref<8x2048xf32, #tpu.memory_space<vmem>>, vector<8x256xf32>
    tpu.vector_store %arg8[%c0_41, %c1024], %82 {strides = array<i32>} : memref<8x2048xf32, #tpu.memory_space<vmem>>, vector<8x256xf32>,
    %84 = vector.extract_strided_slice %73 {offsets = [40, 0], sizes = [8, 256], strides = [1, 1]} : vector<64x256xf32> to vector<8x256xf32>
    %c0_42 = arith.constant 0 : index
    %c1280 = arith.constant 1280 : index
    %85 = vector.load %arg8[%c0_42, %c1280] : memref<8x2048xf32, #tpu.memory_space<vmem>>, vector<8x256xf32>
    tpu.vector_store %arg8[%c0_42, %c1280], %84 {strides = array<i32>} : memref<8x2048xf32, #tpu.memory_space<vmem>>, vector<8x256xf32>,
    %86 = vector.extract_strided_slice %73 {offsets = [48, 0], sizes = [8, 256], strides = [1, 1]} : vector<64x256xf32> to vector<8x256xf32>
    %c0_43 = arith.constant 0 : index
    %c1536 = arith.constant 1536 : index
    %87 = vector.load %arg8[%c0_43, %c1536] : memref<8x2048xf32, #tpu.memory_space<vmem>>, vector<8x256xf32>
    tpu.vector_store %arg8[%c0_43, %c1536], %86 {strides = array<i32>} : memref<8x2048xf32, #tpu.memory_space<vmem>>, vector<8x256xf32>,
    %88 = vector.extract_strided_slice %73 {offsets = [56, 0], sizes = [8, 256], strides = [1, 1]} : vector<64x256xf32> to vector<8x256xf32>
    %c0_44 = arith.constant 0 : index
    %c1792 = arith.constant 1792 : index
    %89 = vector.load %arg8[%c0_44, %c1792] : memref<8x2048xf32, #tpu.memory_space<vmem>>, vector<8x256xf32>
    tpu.vector_store %arg8[%c0_44, %c1792], %88 {strides = array<i32>} : memref<8x2048xf32, #tpu.memory_space<vmem>>, vector<8x256xf32>,
    return
  }
  func.func @transform_0(%arg0: i32) -> (i32, i32) {
    %c0_i32 = arith.constant 0 : i32
    %c0_i32_0 = arith.constant 0 : i32
    return %arg0, %c0_i32 : i32, i32
  }
  func.func @transform_1(%arg0: i32) -> (i32, i32) {
    %c0_i32 = arith.constant 0 : i32
    %c0_i32_0 = arith.constant 0 : i32
    %c0_i32_1 = arith.constant 0 : i32
    return %c0_i32, %c0_i32_0 : i32, i32
  }
  func.func @transform_2(%arg0: i32) -> (i32, i32) {
    %c0_i32 = arith.constant 0 : i32
    %c0_i32_0 = arith.constant 0 : i32
    %c0_i32_1 = arith.constant 0 : i32
    return %c0_i32, %c0_i32_0 : i32, i32
  }
  func.func @transform_3(%arg0: i32) -> (i32, i32) {
    %c0_i32 = arith.constant 0 : i32
    %c0_i32_0 = arith.constant 0 : i32
    %c0_i32_1 = arith.constant 0 : i32
    return %c0_i32, %c0_i32_0 : i32, i32
  }
  func.func @transform_4(%arg0: i32) -> (i32, i32) {
    %c0_i32 = arith.constant 0 : i32
    %c0_i32_0 = arith.constant 0 : i32
    %c0_i32_1 = arith.constant 0 : i32
    return %c0_i32, %c0_i32_0 : i32, i32
  }
  func.func @transform_5(%arg0: i32) -> (i32, i32) {
    %c0_i32 = arith.constant 0 : i32
    %c0_i32_0 = arith.constant 0 : i32
    %c0_i32_1 = arith.constant 0 : i32
    return %c0_i32, %c0_i32_0 : i32, i32
  }
  func.func @transform_6(%arg0: i32) -> (i32, i32) {
    %c0_i32 = arith.constant 0 : i32
    %c0_i32_0 = arith.constant 0 : i32
    %c0_i32_1 = arith.constant 0 : i32
    return %c0_i32, %c0_i32_0 : i32, i32
  }
  func.func @transform_7(%arg0: i32) -> (i32, i32) {
    %c0_i32 = arith.constant 0 : i32
    %c0_i32_0 = arith.constant 0 : i32
    return %c0_i32, %arg0 : i32, i32
  }
  func.func @transform_8(%arg0: i32) -> (i32, i32) {
    %c0_i32 = arith.constant 0 : i32
    %c0_i32_0 = arith.constant 0 : i32
    %c0_i32_1 = arith.constant 0 : i32
    return %c0_i32, %c0_i32_0 : i32, i32
  }
}

</mosaic_0001>

<llo_original>
// kernel: tpu_custom_call.1
$region0: #{tpu_custom_call.1}
  #allocation0 [shape = 'u32[]', space=smem, size = 0x4, offset = 0x4, fixed_abs, tag = 'smem constant byte address 0x4 - core index']
  #allocation1 [shape = 'u32[72,128]{1,0:T(1,128)}', space=vmem, size = 0x9000, scoped, tag = 'internal scratch']
  #allocation2 [shape = 'bf16[64,128]{1,0:T(8,128)(2,1)}', space=vmem, size = 0x4000, scoped, tag = 'scratch operand']
  %s0 = inlined_call_operand.hbm [shape: bf16[64,64], index: 0, kind: input, shape index: {}]
  %s1 = inlined_call_operand.hbm [shape: f32[8,128], index: 1, kind: input, shape index: {}]
  %s2 = inlined_call_operand.hbm [shape: bf16[64,128], index: 2, kind: input, shape index: {}]
  %s3 = inlined_call_operand.hbm [shape: bf16[128,128], index: 3, kind: input, shape index: {}]
  %s4 = inlined_call_operand.vmem [shape: f32[1,128], index: 4, kind: input, shape index: {}]
  %s5 = inlined_call_operand.hbm [shape: bf16[128,256], index: 5, kind: input, shape index: {}]
  %s6 = inlined_call_operand.vmem [shape: f32[1,256], index: 6, kind: input, shape index: {}]
  %s7 = inlined_call_operand.hbm [shape: f32[8,2048], index: 7, kind: output, shape index: {0}]
  %s8 = inlined_call_operand.hbm [shape: f32[8,128], index: 8, kind: output, shape index: {1}]
  %9 = xla_tuple %s7, %s8
  %s10 = sld [smem:[#allocation0]]
  $region70: #{tpu_custom_call.1} parent=0
    _
  %s12 = ssub.s32 1, %s10
  %s13 = scalar_select 0, %s12, %s10
  $region1: #{tpu_custom_call.1} parent=0
    #allocation3 [shape = 'u8[16384]{0}', space=vmem, size = 0x4000, scoped, tag = 'input window, operand 0, single buffered']
    #allocation4 [shape = 's32[1]{0}', space=sflag, size = 0x4, scoped, tag = 'scoped memory for tpu_custom_call.1']
    #allocation5 [shape = 's32[1]{0}', space=sflag, size = 0x4, scoped, tag = 'scoped memory for tpu_custom_call.1']
    #allocation6 [shape = 'u8[4096]{0}', space=vmem, size = 0x1000, scoped, tag = 'input window, operand 1, single buffered']
    #allocation7 [shape = 's32[1]{0}', space=sflag, size = 0x4, scoped, tag = 'scoped memory for tpu_custom_call.1']
    #allocation8 [shape = 'u8[16384]{0}', space=vmem, size = 0x4000, scoped, tag = 'input window, operand 2, single buffered']
    #allocation9 [shape = 'u8[32768]{0}', space=vmem, size = 0x8000, scoped, tag = 'input window, operand 3, single buffered']
    #allocation10 [shape = 's32[1]{0}', space=sflag, size = 0x4, scoped, tag = 'scoped memory for tpu_custom_call.1']
    #allocation11 [shape = 'u8[65536]{0}', space=vmem, size = 0x10000, scoped, tag = 'input window, operand 5, single buffered']
    #allocation12 [shape = 'u8[65536]{0}', space=vmem, size = 0x10000, scoped, tag = 'output window, operand 0, single buffered']
    #allocation13 [shape = 'u8[4096]{0}', space=vmem, size = 0x1000, scoped, tag = 'output window, operand 1, single buffered']
    #allocation14 [shape = 's32[1]{0}', space=sflag, size = 0x4, scoped, tag = 'scoped memory for tpu_custom_call.1']
    %14 = vsyncpa [#allocation4], 0
    %15 = vsyncpa [#allocation7], 0
    %16 = vsyncpa [#allocation10], 0
    %17 = vsyncpa [#allocation5], 0
    %18 = vsyncpa [#allocation14], 0
    // Predicated region
    $region2: #{tpu_custom_call.1} parent=1 // pred_check
      _
    $region3: #{tpu_custom_call.1} parent=1 // pred_check_branch
      %20 = sbr.rel (0) target = $region5
    $region4: #{tpu_custom_call.1} parent=1 // pred_region
      %22 = vsyncadd [#allocation4], 0
      %s23 = sshll.u32 %s0, 4
      %s24 = int_to_ptr.hbm [resolvable:$true] %s23
      %s25 = sshll.u32 [#allocation3], 4
      %s26 = int_to_ptr.vmem [resolvable:$true] %s25
      %31 = dma.hbm_to_vmem [thread:$0]  %s24, 512, %s26, [#allocation4], 64, 64, 4
    $region5: #{tpu_custom_call.1} parent=1 // pred_fallthru
      _
    // Predicated region
    $region6: #{tpu_custom_call.1} parent=1 // pred_check
      _
    $region7: #{tpu_custom_call.1} parent=1 // pred_check_branch
      %33 = sbr.rel (0) target = $region9
    $region8: #{tpu_custom_call.1} parent=1 // pred_region
      %35 = vsyncadd [#allocation7], 0
      %s37 = sshll.u32 %s1, 4
      %s38 = int_to_ptr.hbm [resolvable:$true] %s37
      %s39 = sshll.u32 [#allocation6], 4
      %s40 = int_to_ptr.vmem [resolvable:$true] %s39
      %42 = dma.hbm_to_vmem [thread:$0]  %s38, 128, %s40, [#allocation7]
    $region9: #{tpu_custom_call.1} parent=1 // pred_fallthru
      _
    // Predicated region
    $region10: #{tpu_custom_call.1} parent=1 // pred_check
      _
    $region11: #{tpu_custom_call.1} parent=1 // pred_check_branch
      %44 = sbr.rel (0) target = $region13
    $region12: #{tpu_custom_call.1} parent=1 // pred_region
      %46 = vsyncadd [#allocation7], 0
      %s47 = sshll.u32 %s2, 4
      %s48 = int_to_ptr.hbm [resolvable:$true] %s47
      %s49 = sshll.u32 [#allocation8], 4
      %s50 = int_to_ptr.vmem [resolvable:$true] %s49
      %55 = dma.hbm_to_vmem [thread:$0]  %s48, 512, %s50, [#allocation7], 64, 64, 4
    $region13: #{tpu_custom_call.1} parent=1 // pred_fallthru
      _
    // Predicated region
    $region14: #{tpu_custom_call.1} parent=1 // pred_check
      _
    $region15: #{tpu_custom_call.1} parent=1 // pred_check_branch
      %57 = sbr.rel (0) target = $region17
    $region16: #{tpu_custom_call.1} parent=1 // pred_region
      %59 = vsyncadd [#allocation10], 0
      %s60 = sshll.u32 %s3, 4
      %s61 = int_to_ptr.hbm [resolvable:$true] %s60
      %s62 = sshll.u32 [#allocation9], 4
      %s63 = int_to_ptr.vmem [resolvable:$true] %s62
      %68 = dma.hbm_to_vmem [thread:$0]  %s61, 1024, %s63, [#allocation10], 64, 64, 4
    $region17: #{tpu_custom_call.1} parent=1 // pred_fallthru
      _
    // Predicated region
    $region18: #{tpu_custom_call.1} parent=1 // pred_check
      _
    $region19: #{tpu_custom_call.1} parent=1 // pred_check_branch
      %70 = sbr.rel (0) target = $region21
    $region20: #{tpu_custom_call.1} parent=1 // pred_region
      _
    $region21: #{tpu_custom_call.1} parent=1 // pred_fallthru
      _
    // Predicated region
    $region22: #{tpu_custom_call.1} parent=1 // pred_check
      _
    $region23: #{tpu_custom_call.1} parent=1 // pred_check_branch
      %72 = sbr.rel (0) target = $region25
    $region24: #{tpu_custom_call.1} parent=1 // pred_region
      %74 = vsyncadd [#allocation10], 0
      %s75 = sshll.u32 %s5, 4
      %s76 = int_to_ptr.hbm [resolvable:$true] %s75
      %s77 = sshll.u32 [#allocation11], 4
      %s78 = int_to_ptr.vmem [resolvable:$true] %s77
      %83 = dma.hbm_to_vmem [thread:$0]  %s76, 2048, %s78, [#allocation10], 128, 128, 8
    $region25: #{tpu_custom_call.1} parent=1 // pred_fallthru
      _
    // Predicated region
    $region26: #{tpu_custom_call.1} parent=1 // pred_check
      _
    $region27: #{tpu_custom_call.1} parent=1 // pred_check_branch
      %85 = sbr.rel (0) target = $region29
    $region28: #{tpu_custom_call.1} parent=1 // pred_region
      _
    $region29: #{tpu_custom_call.1} parent=1 // pred_fallthru
      _
    // Predicated region
    $region30: #{tpu_custom_call.1} parent=1 // pred_check
      _
    $region31: #{tpu_custom_call.1} parent=1 // pred_check_branch
      %87 = sbr.rel (0) target = $region33
    $region32: #{tpu_custom_call.1} parent=1 // pred_region
      %89 = dma.done [#allocation4], 512
    $region33: #{tpu_custom_call.1} parent=1 // pred_fallthru
      _
    // Predicated region
    $region34: #{tpu_custom_call.1} parent=1 // pred_check
      _
    $region35: #{tpu_custom_call.1} parent=1 // pred_check_branch
      %91 = sbr.rel (0) target = $region37
    $region36: #{tpu_custom_call.1} parent=1 // pred_region
      %93 = dma.done [#allocation7], 128
    $region37: #{tpu_custom_call.1} parent=1 // pred_fallthru
      _
    // Predicated region
    $region38: #{tpu_custom_call.1} parent=1 // pred_check
      _
    $region39: #{tpu_custom_call.1} parent=1 // pred_check_branch
      %95 = sbr.rel (0) target = $region41
    $region40: #{tpu_custom_call.1} parent=1 // pred_region
      %97 = dma.done [#allocation7], 512
    $region41: #{tpu_custom_call.1} parent=1 // pred_fallthru
      _
    // Predicated region
    $region42: #{tpu_custom_call.1} parent=1 // pred_check
      _
    $region43: #{tpu_custom_call.1} parent=1 // pred_check_branch
      %99 = sbr.rel (0) target = $region45
    $region44: #{tpu_custom_call.1} parent=1 // pred_region
      %101 = dma.done [#allocation10], 1024
    $region45: #{tpu_custom_call.1} parent=1 // pred_fallthru
      _
    // Predicated region
    $region46: #{tpu_custom_call.1} parent=1 // pred_check
      _
    $region47: #{tpu_custom_call.1} parent=1 // pred_check_branch
      %103 = sbr.rel (0) target = $region49
    $region48: #{tpu_custom_call.1} parent=1 // pred_region
      %105 = dma.done [#allocation10], 2048
    $region49: #{tpu_custom_call.1} parent=1 // pred_fallthru
      _
    %p107 = scmp.eq.s32.totalorder 0, 0
    // Predicated region
    $region50: #{tpu_custom_call.1} parent=1 // pred_check
      %p108 = pneg %p107
    $region51: #{tpu_custom_call.1} parent=1 // pred_check_branch
      %110 = sbr.rel (%p108) target = $region53
    $region52: #{tpu_custom_call.1} parent=1 // pred_region
      %v111 = vld [vmem:[#allocation6] sm:$0xff]
      %112 = vst [vmem:[#allocation13] sm:$0xff] %v111
    $region53: #{tpu_custom_call.1} parent=1 // pred_fallthru
      _
    %v113 = vld [vmem:[#allocation3] sm:$0xf]
    %v114 = vld [vmem:[#allocation3 + $0x4] sm:$0xf]
    %v115 = vld [vmem:[#allocation3 + $0x8] sm:$0xf]
    %v116 = vld [vmem:[#allocation3 + $0xc] sm:$0xf]
    %v117 = vld [vmem:[#allocation3 + $0x10] sm:$0xf]
    %v118 = vld [vmem:[#allocation3 + $0x14] sm:$0xf]
    %v119 = vld [vmem:[#allocation3 + $0x18] sm:$0xf]
    %v120 = vld [vmem:[#allocation3 + $0x1c] sm:$0xf]
    %v121 = vld [vmem:[#allocation8] sm:$0xf]
    %v122 = vld [vmem:[#allocation8 + $0x4] sm:$0xf]
    %v123 = vld [vmem:[#allocation8 + $0x8] sm:$0xf]
    %v124 = vld [vmem:[#allocation8 + $0xc] sm:$0xf]
    %v125 = vld [vmem:[#allocation8 + $0x10] sm:$0xf]
    %v126 = vld [vmem:[#allocation8 + $0x14] sm:$0xf]
    %v127 = vld [vmem:[#allocation8 + $0x18] sm:$0xf]
    %v128 = vld [vmem:[#allocation8 + $0x1c] sm:$0xf]
    %v129 = vld [vmem:[%s4] sm:$0x1]
    %v131 = vperm.slane %v129, 0
    %v141 = vunpack.c.l.b16 %v113
    %v142 = vunpack.c.l.b16 %v114
    %v143 = vunpack.c.l.b16 %v115
    %v144 = vunpack.c.l.b16 %v116
    %v145 = vunpack.c.l.b16 %v117
    %v146 = vunpack.c.l.b16 %v118
    %v147 = vunpack.c.l.b16 %v119
    %v148 = vunpack.c.l.b16 %v120
    %v149 = vpack.c.b16 %v142, %v141
    %v150 = vpack.c.b16 %v144, %v143
    %v151 = vpack.c.b16 %v146, %v145
    %v152 = vpack.c.b16 %v148, %v147
    %v161 = vunpack.c.l.b16 %v121
    %v162 = vunpack.c.l.b16 %v122
    %v163 = vunpack.c.l.b16 %v123
    %v164 = vunpack.c.l.b16 %v124
    %v165 = vunpack.c.l.b16 %v125
    %v166 = vunpack.c.l.b16 %v126
    %v167 = vunpack.c.l.b16 %v127
    %v168 = vunpack.c.l.b16 %v128
    %v169 = vpack.c.b16 %v162, %v161
    %v170 = vpack.c.b16 %v164, %v163
    %v171 = vpack.c.b16 %v166, %v165
    %v172 = vpack.c.b16 %v168, %v167
    %vm177 = vcmask 523264
    %v179 = vsel %vm177, %v149, 0
    %v182 = vsel %vm177, %v150, 0
    %v185 = vsel %vm177, %v151, 0
    %v188 = vsel %vm177, %v152, 0
    %190 = vmatpush.bf16.msra.mxu0 0
    %191 = vmatpush.bf16.msra.mxu0 0
    %192 = vmatpush.bf16.msra.mxu0 0
    %193 = vmatpush.bf16.msra.mxu0 0
    %194 = vmatpush.bf16.msra.mxu0 %v172
    %195 = vmatpush.bf16.msra.mxu0 %v171
    %196 = vmatpush.bf16.msra.mxu0 %v170
    %197 = vmatpush.bf16.msra.mxu0 %v169
    %198 = vmatmul.bf16.gmra.mxu0 %v179
    %v199 = vpop.f32.mrf.mxu0
    %v200 = vadd.f32 %v131, %v199
    %v201 = vpop.f32.mrf.mxu0
    %v202 = vadd.f32 %v131, %v201
    %203 = vmatmul.bf16.gmra.mxu0 %v182
    %v204 = vpop.f32.mrf.mxu0
    %v205 = vadd.f32 %v131, %v204
    %v206 = vpop.f32.mrf.mxu0
    %v207 = vadd.f32 %v131, %v206
    %208 = vmatmul.bf16.gmra.mxu0 %v185
    %v209 = vpop.f32.mrf.mxu0
    %v210 = vadd.f32 %v131, %v209
    %v211 = vpop.f32.mrf.mxu0
    %v212 = vadd.f32 %v131, %v211
    %213 = vmatmul.bf16.gmra.mxu0 %v188
    %v214 = vpop.f32.mrf.mxu0
    %v215 = vadd.f32 %v131, %v214
    %v216 = vpop.f32.mrf.mxu0
    %v217 = vadd.f32 %v131, %v216
    %218 = vdwg.mxu0
    %v219 = vld [vmem:[#allocation9] sm:$0xf]
    %v220 = vld [vmem:[#allocation9 + $0x4] sm:$0xf]
    %v221 = vld [vmem:[#allocation9 + $0x8] sm:$0xf]
    %v222 = vld [vmem:[#allocation9 + $0xc] sm:$0xf]
    %v223 = vld [vmem:[#allocation9 + $0x10] sm:$0xf]
    %v224 = vld [vmem:[#allocation9 + $0x14] sm:$0xf]
    %v225 = vld [vmem:[#allocation9 + $0x18] sm:$0xf]
    %v226 = vld [vmem:[#allocation9 + $0x1c] sm:$0xf]
    %v227 = vld [vmem:[#allocation9 + $0x20] sm:$0xf]
    %v228 = vld [vmem:[#allocation9 + $0x24] sm:$0xf]
    %v229 = vld [vmem:[#allocation9 + $0x28] sm:$0xf]
    %v230 = vld [vmem:[#allocation9 + $0x2c] sm:$0xf]
    %v231 = vld [vmem:[#allocation9 + $0x30] sm:$0xf]
    %v232 = vld [vmem:[#allocation9 + $0x34] sm:$0xf]
    %v233 = vld [vmem:[#allocation9 + $0x38] sm:$0xf]
    %v234 = vld [vmem:[#allocation9 + $0x3c] sm:$0xf]
    %v235 = vld [vmem:[#allocation13] sm:$0xff]
    %v236 = vpack.c.bf16 %v235, %v235
    %v253 = vunpack.c.l.b16 %v219
    %v254 = vunpack.c.l.b16 %v220
    %v255 = vunpack.c.l.b16 %v221
    %v256 = vunpack.c.l.b16 %v222
    %v257 = vunpack.c.l.b16 %v223
    %v258 = vunpack.c.l.b16 %v224
    %v259 = vunpack.c.l.b16 %v225
    %v260 = vunpack.c.l.b16 %v226
    %v261 = vunpack.c.l.b16 %v227
    %v262 = vunpack.c.l.b16 %v228
    %v263 = vunpack.c.l.b16 %v229
    %v264 = vunpack.c.l.b16 %v230
    %v265 = vunpack.c.l.b16 %v231
    %v266 = vunpack.c.l.b16 %v232
    %v267 = vunpack.c.l.b16 %v233
    %v268 = vunpack.c.l.b16 %v234
    %v269 = vpack.c.b16 %v254, %v253
    %v270 = vpack.c.b16 %v256, %v255
    %v271 = vpack.c.b16 %v258, %v257
    %v272 = vpack.c.b16 %v260, %v259
    %v273 = vpack.c.b16 %v262, %v261
    %v274 = vpack.c.b16 %v264, %v263
    %v275 = vpack.c.b16 %v266, %v265
    %v276 = vpack.c.b16 %v268, %v267
    %285 = vmatpush.bf16.msra.mxu0 %v276
    %286 = vmatpush.bf16.msra.mxu0 %v275
    %287 = vmatpush.bf16.msra.mxu0 %v274
    %288 = vmatpush.bf16.msra.mxu0 %v273
    %289 = vmatpush.bf16.msra.mxu0 %v272
    %290 = vmatpush.bf16.msra.mxu0 %v271
    %291 = vmatpush.bf16.msra.mxu0 %v270
    %292 = vmatpush.bf16.msra.mxu0 %v269
    %293 = vmatmul.bf16.gmra.mxu0 %v236
    %v294 = vpop.f32.mrf.mxu0
    %v295 = vadd.f32 0.0, %v294
    %v296 = vpop.f32.mrf.mxu0
    %297 = vdwg.mxu0
    %v298 = vadd.f32 %v200, %v295
    %v299 = vtanh.pop %v298
    %v300 = vpack.c.bf16 %v299, %v299
    %301 = vst [vmem:[#allocation2] sm:$0xf] %v300
    %302 = vmatpush.bf16.msra.mxu0 %v276
    %303 = vmatpush.bf16.msra.mxu0 %v275
    %304 = vmatpush.bf16.msra.mxu0 %v274
    %305 = vmatpush.bf16.msra.mxu0 %v273
    %306 = vmatpush.bf16.msra.mxu0 %v272
    %307 = vmatpush.bf16.msra.mxu0 %v271
    %308 = vmatpush.bf16.msra.mxu0 %v270
    %309 = vmatpush.bf16.msra.mxu0 %v269
    %310 = vmatmul.bf16.gmra.mxu0 %v300
    %v311 = vpop.f32.mrf.mxu0
    %v312 = vadd.f32 0.0, %v311
    %v313 = vpop.f32.mrf.mxu0
    %314 = vdwg.mxu0
    %v315 = vadd.f32 %v202, %v312
    %v316 = vtanh.pop %v315
    %v317 = vpack.c.bf16 %v316, %v316
    %318 = vst [vmem:[#allocation2 + $0x4] sm:$0xf] %v317
    %319 = vmatpush.bf16.msra.mxu0 %v276
    %320 = vmatpush.bf16.msra.mxu0 %v275
    %321 = vmatpush.bf16.msra.mxu0 %v274
    %322 = vmatpush.bf16.msra.mxu0 %v273
    %323 = vmatpush.bf16.msra.mxu0 %v272
    %324 = vmatpush.bf16.msra.mxu0 %v271
    %325 = vmatpush.bf16.msra.mxu0 %v270
    %326 = vmatpush.bf16.msra.mxu0 %v269
    %327 = vmatmul.bf16.gmra.mxu0 %v317
    %v328 = vpop.f32.mrf.mxu0
    %v329 = vadd.f32 0.0, %v328
    %v330 = vpop.f32.mrf.mxu0
    %331 = vdwg.mxu0
    %v332 = vadd.f32 %v205, %v329
    %v333 = vtanh.pop %v332
    %v334 = vpack.c.bf16 %v333, %v333
    %335 = vst [vmem:[#allocation2 + $0x8] sm:$0xf] %v334
    %336 = vmatpush.bf16.msra.mxu0 %v276
    %337 = vmatpush.bf16.msra.mxu0 %v275
    %338 = vmatpush.bf16.msra.mxu0 %v274
    %339 = vmatpush.bf16.msra.mxu0 %v273
    %340 = vmatpush.bf16.msra.mxu0 %v272
    %341 = vmatpush.bf16.msra.mxu0 %v271
    %342 = vmatpush.bf16.msra.mxu0 %v270
    %343 = vmatpush.bf16.msra.mxu0 %v269
    %344 = vmatmul.bf16.gmra.mxu0 %v334
    %v345 = vpop.f32.mrf.mxu0
    %v346 = vadd.f32 0.0, %v345
    %v347 = vpop.f32.mrf.mxu0
    %348 = vdwg.mxu0
    %v349 = vadd.f32 %v207, %v346
    %v350 = vtanh.pop %v349
    %v351 = vpack.c.bf16 %v350, %v350
    %352 = vst [vmem:[#allocation2 + $0xc] sm:$0xf] %v351
    %353 = vmatpush.bf16.msra.mxu0 %v276
    %354 = vmatpush.bf16.msra.mxu0 %v275
    %355 = vmatpush.bf16.msra.mxu0 %v274
    %356 = vmatpush.bf16.msra.mxu0 %v273
    %357 = vmatpush.bf16.msra.mxu0 %v272
    %358 = vmatpush.bf16.msra.mxu0 %v271
    %359 = vmatpush.bf16.msra.mxu0 %v270
    %360 = vmatpush.bf16.msra.mxu0 %v269
    %361 = vmatmul.bf16.gmra.mxu0 %v351
    %v362 = vpop.f32.mrf.mxu0
    %v363 = vadd.f32 0.0, %v362
    %v364 = vpop.f32.mrf.mxu0
    %365 = vdwg.mxu0
    %v366 = vadd.f32 %v210, %v363
    %v367 = vtanh.pop %v366
    %v368 = vpack.c.bf16 %v367, %v367
    %369 = vst [vmem:[#allocation2 + $0x10] sm:$0xf] %v368
    %370 = vmatpush.bf16.msra.mxu0 %v276
    %371 = vmatpush.bf16.msra.mxu0 %v275
    %372 = vmatpush.bf16.msra.mxu0 %v274
    %373 = vmatpush.bf16.msra.mxu0 %v273
    %374 = vmatpush.bf16.msra.mxu0 %v272
    %375 = vmatpush.bf16.msra.mxu0 %v271
    %376 = vmatpush.bf16.msra.mxu0 %v270
    %377 = vmatpush.bf16.msra.mxu0 %v269
    %378 = vmatmul.bf16.gmra.mxu0 %v368
    %v379 = vpop.f32.mrf.mxu0
    %v380 = vadd.f32 0.0, %v379
    %v381 = vpop.f32.mrf.mxu0
    %382 = vdwg.mxu0
    %v383 = vadd.f32 %v212, %v380
    %v384 = vtanh.pop %v383
    %v385 = vpack.c.bf16 %v384, %v384
    %386 = vst [vmem:[#allocation2 + $0x14] sm:$0xf] %v385
    %387 = vmatpush.bf16.msra.mxu0 %v276
    %388 = vmatpush.bf16.msra.mxu0 %v275
    %389 = vmatpush.bf16.msra.mxu0 %v274
    %390 = vmatpush.bf16.msra.mxu0 %v273
    %391 = vmatpush.bf16.msra.mxu0 %v272
    %392 = vmatpush.bf16.msra.mxu0 %v271
    %393 = vmatpush.bf16.msra.mxu0 %v270
    %394 = vmatpush.bf16.msra.mxu0 %v269
    %395 = vmatmul.bf16.gmra.mxu0 %v385
    %v396 = vpop.f32.mrf.mxu0
    %v397 = vadd.f32 0.0, %v396
    %v398 = vpop.f32.mrf.mxu0
    %399 = vdwg.mxu0
    %v400 = vadd.f32 %v215, %v397
    %v401 = vtanh.pop %v400
    %v402 = vpack.c.bf16 %v401, %v401
    %403 = vst [vmem:[#allocation2 + $0x18] sm:$0xf] %v402
    %404 = vmatpush.bf16.msra.mxu0 %v276
    %405 = vmatpush.bf16.msra.mxu0 %v275
    %406 = vmatpush.bf16.msra.mxu0 %v274
    %407 = vmatpush.bf16.msra.mxu0 %v273
    %408 = vmatpush.bf16.msra.mxu0 %v272
    %409 = vmatpush.bf16.msra.mxu0 %v271
    %410 = vmatpush.bf16.msra.mxu0 %v270
    %411 = vmatpush.bf16.msra.mxu0 %v269
    %412 = vmatmul.bf16.gmra.mxu0 %v402
    %v413 = vpop.f32.mrf.mxu0
    %v414 = vadd.f32 0.0, %v413
    %v415 = vpop.f32.mrf.mxu0
    %416 = vdwg.mxu0
    %v417 = vadd.f32 %v217, %v414
    %v418 = vtanh.pop %v417
    %v419 = vpack.c.bf16 %v418, %v418
    %420 = vst [vmem:[#allocation2 + $0x1c] sm:$0xf] %v419
    %421 = vst [vmem:[#allocation13] sm:$0xff] %v418
    %v422 = vld [vmem:[#allocation2] sm:$0xf]
    %v423 = vld [vmem:[#allocation2 + $0x4] sm:$0xf]
    %v424 = vld [vmem:[#allocation2 + $0x8] sm:$0xf]
    %v425 = vld [vmem:[#allocation2 + $0xc] sm:$0xf]
    %v426 = vld [vmem:[#allocation2 + $0x10] sm:$0xf]
    %v427 = vld [vmem:[#allocation2 + $0x14] sm:$0xf]
    %v428 = vld [vmem:[#allocation2 + $0x18] sm:$0xf]
    %v429 = vld [vmem:[#allocation2 + $0x1c] sm:$0xf]
    %v430 = vld [vmem:[#allocation11] sm:$0xff]
    %v431 = vld [vmem:[#allocation11 + $0x8] sm:$0xff]
    %v432 = vld [vmem:[#allocation11 + $0x10] sm:$0xff]
    %v433 = vld [vmem:[#allocation11 + $0x18] sm:$0xff]
    %v434 = vld [vmem:[#allocation11 + $0x20] sm:$0xff]
    %v435 = vld [vmem:[#allocation11 + $0x28] sm:$0xff]
    %v436 = vld [vmem:[#allocation11 + $0x30] sm:$0xff]
    %v437 = vld [vmem:[#allocation11 + $0x38] sm:$0xff]
    %v438 = vld [vmem:[#allocation11 + $0x40] sm:$0xff]
    %v439 = vld [vmem:[#allocation11 + $0x48] sm:$0xff]
    %v440 = vld [vmem:[#allocation11 + $0x50] sm:$0xff]
    %v441 = vld [vmem:[#allocation11 + $0x58] sm:$0xff]
    %v442 = vld [vmem:[#allocation11 + $0x60] sm:$0xff]
    %v443 = vld [vmem:[#allocation11 + $0x68] sm:$0xff]
    %v444 = vld [vmem:[#allocation11 + $0x70] sm:$0xff]
    %v445 = vld [vmem:[#allocation11 + $0x78] sm:$0xff]
    %v446 = vld [vmem:[%s6] sm:$0x3]
    %v448 = vperm.slane %v446, 0
    %v449 = vperm.slane %v446, 1
    %v460 = vunpack.c.l.b16 %v422
    %v461 = vunpack.c.l.b16 %v423
    %v462 = vunpack.c.l.b16 %v424
    %v463 = vunpack.c.l.b16 %v425
    %v464 = vunpack.c.l.b16 %v426
    %v465 = vunpack.c.l.b16 %v427
    %v466 = vunpack.c.l.b16 %v428
    %v467 = vunpack.c.l.b16 %v429
    %v468 = vpack.c.b16 %v461, %v460
    %v469 = vpack.c.b16 %v463, %v462
    %v470 = vpack.c.b16 %v465, %v464
    %v471 = vpack.c.b16 %v467, %v466
    %v492 = vunpack.c.l.b16 %v430
    %v493 = vunpack.c.h.b16 %v430
    %v494 = vunpack.c.l.b16 %v431
    %v495 = vunpack.c.h.b16 %v431
    %v496 = vunpack.c.l.b16 %v432
    %v497 = vunpack.c.h.b16 %v432
    %v498 = vunpack.c.l.b16 %v433
    %v499 = vunpack.c.h.b16 %v433
    %v500 = vunpack.c.l.b16 %v434
    %v501 = vunpack.c.h.b16 %v434
    %v502 = vunpack.c.l.b16 %v435
    %v503 = vunpack.c.h.b16 %v435
    %v504 = vunpack.c.l.b16 %v436
    %v505 = vunpack.c.h.b16 %v436
    %v506 = vunpack.c.l.b16 %v437
    %v507 = vunpack.c.h.b16 %v437
    %v508 = vunpack.c.l.b16 %v438
    %v509 = vunpack.c.h.b16 %v438
    %v510 = vunpack.c.l.b16 %v439
    %v511 = vunpack.c.h.b16 %v439
    %v512 = vunpack.c.l.b16 %v440
    %v513 = vunpack.c.h.b16 %v440
    %v514 = vunpack.c.l.b16 %v441
    %v515 = vunpack.c.h.b16 %v441
    %v516 = vunpack.c.l.b16 %v442
    %v517 = vunpack.c.h.b16 %v442
    %v518 = vunpack.c.l.b16 %v443
    %v519 = vunpack.c.h.b16 %v443
    %v520 = vunpack.c.l.b16 %v444
    %v521 = vunpack.c.h.b16 %v444
    %v522 = vunpack.c.l.b16 %v445
    %v523 = vunpack.c.h.b16 %v445
    %v524 = vpack.c.b16 %v494, %v492
    %v525 = vpack.c.b16 %v495, %v493
    %v526 = vpack.c.b16 %v498, %v496
    %v527 = vpack.c.b16 %v499, %v497
    %v528 = vpack.c.b16 %v502, %v500
    %v529 = vpack.c.b16 %v503, %v501
    %v530 = vpack.c.b16 %v506, %v504
    %v531 = vpack.c.b16 %v507, %v505
    %v532 = vpack.c.b16 %v510, %v508
    %v533 = vpack.c.b16 %v511, %v509
    %v534 = vpack.c.b16 %v514, %v512
    %v535 = vpack.c.b16 %v515, %v513
    %v536 = vpack.c.b16 %v518, %v516
    %v537 = vpack.c.b16 %v519, %v517
    %v538 = vpack.c.b16 %v522, %v520
    %v539 = vpack.c.b16 %v523, %v521
    %556 = vmatpush.bf16.msra.mxu0 %v538
    %557 = vmatpush.bf16.msra.mxu0 %v536
    %558 = vmatpush.bf16.msra.mxu0 %v534
    %559 = vmatpush.bf16.msra.mxu0 %v532
    %560 = vmatpush.bf16.msra.mxu0 %v530
    %561 = vmatpush.bf16.msra.mxu0 %v528
    %562 = vmatpush.bf16.msra.mxu0 %v526
    %563 = vmatpush.bf16.msra.mxu0 %v524
    %564 = vmatmul.bf16.gmra.mxu0 %v468
    %v565 = vpop.f32.mrf.mxu0
    %v566 = vadd.f32 %v448, %v565
    %v567 = vpop.f32.mrf.mxu0
    %v568 = vadd.f32 %v448, %v567
    %569 = vmatmul.bf16.gmra.mxu0 %v469
    %v570 = vpop.f32.mrf.mxu0
    %v571 = vadd.f32 %v448, %v570
    %v572 = vpop.f32.mrf.mxu0
    %v573 = vadd.f32 %v448, %v572
    %574 = vmatmul.bf16.gmra.mxu0 %v470
    %v575 = vpop.f32.mrf.mxu0
    %v576 = vadd.f32 %v448, %v575
    %v577 = vpop.f32.mrf.mxu0
    %v578 = vadd.f32 %v448, %v577
    %579 = vmatmul.bf16.gmra.mxu0 %v471
    %v580 = vpop.f32.mrf.mxu0
    %v581 = vadd.f32 %v448, %v580
    %v582 = vpop.f32.mrf.mxu0
    %v583 = vadd.f32 %v448, %v582
    %584 = vdwg.mxu0
    %585 = vmatpush.bf16.msra.mxu0 %v539
    %586 = vmatpush.bf16.msra.mxu0 %v537
    %587 = vmatpush.bf16.msra.mxu0 %v535
    %588 = vmatpush.bf16.msra.mxu0 %v533
    %589 = vmatpush.bf16.msra.mxu0 %v531
    %590 = vmatpush.bf16.msra.mxu0 %v529
    %591 = vmatpush.bf16.msra.mxu0 %v527
    %592 = vmatpush.bf16.msra.mxu0 %v525
    %593 = vmatmul.bf16.gmra.mxu0 %v468
    %v594 = vpop.f32.mrf.mxu0
    %v595 = vadd.f32 %v449, %v594
    %v596 = vpop.f32.mrf.mxu0
    %v597 = vadd.f32 %v449, %v596
    %598 = vmatmul.bf16.gmra.mxu0 %v469
    %v599 = vpop.f32.mrf.mxu0
    %v600 = vadd.f32 %v449, %v599
    %v601 = vpop.f32.mrf.mxu0
    %v602 = vadd.f32 %v449, %v601
    %603 = vmatmul.bf16.gmra.mxu0 %v470
    %v604 = vpop.f32.mrf.mxu0
    %v605 = vadd.f32 %v449, %v604
    %v606 = vpop.f32.mrf.mxu0
    %v607 = vadd.f32 %v449, %v606
    %608 = vmatmul.bf16.gmra.mxu0 %v471
    %v609 = vpop.f32.mrf.mxu0
    %v610 = vadd.f32 %v449, %v609
    %v611 = vpop.f32.mrf.mxu0
    %v612 = vadd.f32 %v449, %v611
    %613 = vdwg.mxu0
    %614 = vst [vmem:[#allocation12] sm:$0xff] %v566
    %615 = vst [vmem:[#allocation12 + $0x8] sm:$0xff] %v595
    %616 = vst [vmem:[#allocation12 + $0x10] sm:$0xff] %v568
    %617 = vst [vmem:[#allocation12 + $0x18] sm:$0xff] %v597
    %618 = vst [vmem:[#allocation12 + $0x20] sm:$0xff] %v571
    %619 = vst [vmem:[#allocation12 + $0x28] sm:$0xff] %v600
    %620 = vst [vmem:[#allocation12 + $0x30] sm:$0xff] %v573
    %621 = vst [vmem:[#allocation12 + $0x38] sm:$0xff] %v602
    %622 = vst [vmem:[#allocation12 + $0x40] sm:$0xff] %v576
    %623 = vst [vmem:[#allocation12 + $0x48] sm:$0xff] %v605
    %624 = vst [vmem:[#allocation12 + $0x50] sm:$0xff] %v578
    %625 = vst [vmem:[#allocation12 + $0x58] sm:$0xff] %v607
    %626 = vst [vmem:[#allocation12 + $0x60] sm:$0xff] %v581
    %627 = vst [vmem:[#allocation12 + $0x68] sm:$0xff] %v610
    %628 = vst [vmem:[#allocation12 + $0x70] sm:$0xff] %v583
    %629 = vst [vmem:[#allocation12 + $0x78] sm:$0xff] %v612
    // Predicated region
    $region54: #{tpu_custom_call.1} parent=1 // pred_check
      _
    $region55: #{tpu_custom_call.1} parent=1 // pred_check_branch
      %631 = sbr.rel (0) target = $region57
    $region56: #{tpu_custom_call.1} parent=1 // pred_region
      %633 = vsyncadd [#allocation5], 0
      %s635 = sshll.u32 [#allocation12], 4
      %s636 = int_to_ptr.vmem [resolvable:$true] %s635
      %s637 = sshll.u32 %s7, 4
      %s638 = int_to_ptr.hbm [resolvable:$true] %s637
      %640 = dma.vmem_to_hbm [thread:$0]  %s636, 2048, %s638, [#allocation5]
    $region57: #{tpu_custom_call.1} parent=1 // pred_fallthru
      _
    // Predicated region
    $region58: #{tpu_custom_call.1} parent=1 // pred_check
      _
    $region59: #{tpu_custom_call.1} parent=1 // pred_check_branch
      %642 = sbr.rel (0) target = $region61
    $region60: #{tpu_custom_call.1} parent=1 // pred_region
      %644 = vsyncadd [#allocation14], 0
      %s646 = sshll.u32 [#allocation13], 4
      %s647 = int_to_ptr.vmem [resolvable:$true] %s646
      %s648 = sshll.u32 %s8, 4
      %s649 = int_to_ptr.hbm [resolvable:$true] %s648
      %651 = dma.vmem_to_hbm [thread:$0]  %s647, 128, %s649, [#allocation14]
    $region61: #{tpu_custom_call.1} parent=1 // pred_fallthru
      _
    // Predicated region
    $region62: #{tpu_custom_call.1} parent=1 // pred_check
      _
    $region63: #{tpu_custom_call.1} parent=1 // pred_check_branch
      %653 = sbr.rel (0) target = $region65
    $region64: #{tpu_custom_call.1} parent=1 // pred_region
      %655 = dma.done [#allocation5], 2048
    $region65: #{tpu_custom_call.1} parent=1 // pred_fallthru
      _
    // Predicated region
    $region66: #{tpu_custom_call.1} parent=1 // pred_check
      _
    $region67: #{tpu_custom_call.1} parent=1 // pred_check_branch
      %657 = sbr.rel (0) target = $region69
    $region68: #{tpu_custom_call.1} parent=1 // pred_region
      %659 = dma.done [#allocation14], 128
    $region69: #{tpu_custom_call.1} parent=1 // pred_fallthru
      _
    %660 = vsyncpa [#allocation4], 1
    %661 = vsyncpa [#allocation7], 1
    %662 = vsyncpa [#allocation10], 1
    %663 = vsyncpa [#allocation5], 1
    %664 = vsyncpa [#allocation14], 1

</llo_original>
